<compile_context>
chip_gen: v7x
topology: tpu7x:2x2x1
jax: 0.10.0
libtpu: 0.0.40
codegen_flags: <defaults>
</compile_context>

<pallas_src>
import functools
import math

import jax
import jax.numpy as jnp
import numpy as np
from jax.experimental import pallas as pl
from jax.experimental.pallas import tpu as pltpu


COMPUTE_DTYPE = jnp.bfloat16            # MXU-native operand dtype; accumulation is f32.
_TILE_BUDGET_BYTES = 36 * 1024 * 1024   # per-kernel VMEM budget used to pick tiles
_VMEM_LIMIT_BYTES = 48 * 1024 * 1024    # scoped VMEM limit (fits v5e/v6e 128MiB, v7x 64MiB)

_ROW_TILES = (512, 256, 128, 64, 32, 16, 8)     # multiples of 8 (sublane rule)
_COL_TILES = (2048, 1024, 512, 256, 128)        # multiples of 128 (lane rule)


def _divisor_tiles(n, candidates):
    """Tile candidates for extent n, largest first; full extent always legal."""
    tiles = [t for t in candidates if t < n and n % t == 0]
    return sorted(set(tiles + [n]), reverse=True)


def _select_tiles(n_rows, n_cols, vmem_fn, budget):
    """Largest (row, col) tile pair whose estimated VMEM footprint fits the budget."""
    col_cands = _divisor_tiles(n_cols, _COL_TILES)
    row_cands = _divisor_tiles(n_rows, _ROW_TILES)
    for tn in col_cands:
        for tm in row_cands:
            if vmem_fn(tm, tn) <= budget:
                return tm, tn
    return row_cands[-1], col_cands[-1]


def _layernorm_f32(x, g, b, eps):
    """x: (rows, D) f32; g/b: (1, D). torch-style unbiased std, /(std+eps), exact divide."""
    d = x.shape[-1]
    mean = jnp.mean(x, axis=-1, keepdims=True)
    xc = x - mean
    std = jnp.sqrt(jnp.sum(xc * xc, axis=-1, keepdims=True) * (1.0 / (d - 1)))
    # Exact divide here: the LN reciprocal error would otherwise propagate through
    # every downstream matmul.  (approx reciprocal is reserved for the softmax denom.)
    return g * xc / (std + eps) + b


# ---------------------------- fused LN + Linear ------------------------------ #

def _fused_linear_kernel(*refs, eps, apply_ln):
    # ref order: x, [gamma, beta], w, bias, out
    if apply_ln:
        x_ref, g_ref, b_ref, w_ref, wb_ref, o_ref = refs
    else:
        x_ref, w_ref, wb_ref, o_ref = refs

    x = x_ref[...]
    if apply_ln:
        x = _layernorm_f32(x.astype(jnp.float32), g_ref[...].astype(jnp.float32),
                           b_ref[...].astype(jnp.float32), eps)
    y = jnp.dot(x.astype(w_ref.dtype), w_ref[...],           # bf16 x bf16 -> f32 acc
                preferred_element_type=jnp.float32)
    y = y + wb_ref[...].astype(jnp.float32)
    o_ref[...] = y.astype(o_ref.dtype)


def fused_linear(x2d, w, b, *, gamma=None, beta=None, eps=1e-6, out_dtype=None):
    """y = [LN](x) @ w + b, tiled over (out-cols, rows).

    Grid order is (col-tiles, row-tiles) so the (Din, tn) weight panel is loop-invariant
    over the inner (row) axis and is streamed from HBM exactly once; only the small
    (tm, Din) activation tile is re-read per column tile.  Contraction (Din) is kept
    whole because the fused LayerNorm needs full feature rows anyway.
    """
    N, Din = x2d.shape
    Dout = w.shape[1]
    out_dtype = out_dtype or x2d.dtype
    apply_ln = gamma is not None

    def vmem_fn(tm, tn):
        return 2 * (tm * Din * x2d.dtype.itemsize      # activation tile (double buffered)
                    + Din * tn * w.dtype.itemsize      # weight panel
                    + tn * 4 + 2 * Din * 4             # bias + gamma/beta
                    + tm * tn * jnp.dtype(out_dtype).itemsize)
    tm, tn = _select_tiles(N, Dout, vmem_fn, _TILE_BUDGET_BYTES)

    in_specs = [pl.BlockSpec((tm, Din), lambda j, i: (i, 0))]
    inputs = [x2d]
    if apply_ln:
        in_specs += [pl.BlockSpec((1, Din), lambda j, i: (0, 0)),
                     pl.BlockSpec((1, Din), lambda j, i: (0, 0))]
        inputs += [gamma.reshape(1, Din), beta.reshape(1, Din)]
    in_specs += [pl.BlockSpec((Din, tn), lambda j, i: (0, j)),   # loop-invariant over i
                 pl.BlockSpec((1, tn), lambda j, i: (0, j))]
    inputs += [w, b.reshape(1, Dout)]

    kernel = functools.partial(_fused_linear_kernel, eps=eps, apply_ln=apply_ln)
    return pl.pallas_call(
        kernel,
        out_shape=jax.ShapeDtypeStruct((N, Dout), out_dtype),
        grid=(Dout // tn, N // tm),                   # weight-panel axis outermost
        in_specs=in_specs,
        out_specs=pl.BlockSpec((tm, tn), lambda j, i: (i, j)),
        compiler_params=pltpu.CompilerParams(
            dimension_semantics=("parallel", "parallel"),
            vmem_limit_bytes=_VMEM_LIMIT_BYTES),
    )(*inputs)


# ---------------- attention core (+ fused Wo projection + residual) ---------- #

def _attn_core_kernel(*refs, num_heads, scale, packed_qkv):
    # self-attn:  (qkv, mask, wo, bo, residual, out), qkv block (1, T, 3D)
    # cross-attn: (q, kv, mask, wo, bo, residual, out), q (1, Tq, D), kv (1, Tk, 2D)
    if packed_qkv:
        qkv_ref, m_ref, wo_ref, bo_ref, res_ref, o_ref = refs
        qkv = qkv_ref[0]                                      # (T, 3D) bf16
        D = qkv.shape[-1] // 3
        q, k, v = qkv[:, :D], qkv[:, D:2 * D], qkv[:, 2 * D:]
    else:
        q_ref, kv_ref, m_ref, wo_ref, bo_ref, res_ref, o_ref = refs
        q = q_ref[0]                                          # (Tq, D) bf16
        kv = kv_ref[0]                                        # (Tk, 2D) bf16
        D = q.shape[-1]
        k, v = kv[:, :D], kv[:, D:]

    # Mask -> additive bias, hoisted out of the head loop (computed once per grid step).
    bias = jnp.where(m_ref[0] > 0, 0.0, -1e9).astype(jnp.float32)   # (Tm, Tk)

    dk = D // num_heads
    # TODO(synk): move the head split into the grid / pack heads per MXU call when
    #             dk >= 128; flash-style KV tiling for long Tk.
    head_outs = []
    for h in range(num_heads):
        qh = q[:, h * dk:(h + 1) * dk]
        kh = k[:, h * dk:(h + 1) * dk]
        vh = v[:, h * dk:(h + 1) * dk]
        s = jax.lax.dot_general(qh, kh, (((1,), (1,)), ((), ())),    # bf16 -> f32 acc
                                preferred_element_type=jnp.float32) * scale + bias
        s = s - jnp.max(s, axis=-1, keepdims=True)
        p = jnp.exp(s)
        p = p * pl.reciprocal(jnp.sum(p, axis=-1, keepdims=True), approx=True)
        head_outs.append(jnp.dot(p.astype(vh.dtype), vh,             # bf16 P @ bf16 V
                                 preferred_element_type=jnp.float32))

    # One lane-dense (Tq, D) value; fused Wo projection + residual; single dense store.
    o = jnp.concatenate(head_outs, axis=-1)                          # (Tq, D) f32
    y = jnp.dot(o.astype(wo_ref.dtype), wo_ref[...],
                preferred_element_type=jnp.float32)
    y = y + bo_ref[...].astype(jnp.float32) + res_ref[0].astype(jnp.float32)
    o_ref[...] = y[None].astype(o_ref.dtype)


def _mask_index_map(Bm):
    # Mask is NOT broadcast to (B*H, Tq, Tk); the original array is aliased per step.
    if Bm == 1:
        return lambda b: (0, 0, 0)
    return lambda b: (b, 0, 0)


def attention_block(q_or_qkv, kv, mask, wo, bo, residual, num_heads):
    """Attention core + Wo + residual, one grid step per batch element.

    q_or_qkv: (B, T, 3D) packed QKV (self-attn, kv=None) or (B, Tq, D) queries.
    kv:       None or (B, Tk, 2D) packed K|V (cross-attn).
    mask:     (1 or B, 1 or Tq, Tk).  residual: (B, Tq, D) f32.
    """
    packed_qkv = kv is None
    B, Tq = q_or_qkv.shape[0], q_or_qkv.shape[1]
    D = residual.shape[-1]
    Tk = Tq if packed_qkv else kv.shape[1]
    Bm, Tm, _ = mask.shape
    scale = 1.0 / math.sqrt(D // num_heads)

    in_specs = [pl.BlockSpec((1, Tq, q_or_qkv.shape[-1]), lambda b: (b, 0, 0))]
    inputs = [q_or_qkv]
    if not packed_qkv:
        in_specs.append(pl.BlockSpec((1, Tk, kv.shape[-1]), lambda b: (b, 0, 0)))
        inputs.append(kv)
    in_specs += [pl.BlockSpec((1, Tm, Tk), _mask_index_map(Bm)),
                 pl.BlockSpec((D, D), lambda b: (0, 0)),        # Wo, loop-invariant
                 pl.BlockSpec((1, D), lambda b: (0, 0)),
                 pl.BlockSpec((1, Tq, D), lambda b: (b, 0, 0))]  # residual
    inputs += [mask, wo, bo.reshape(1, D), residual]

    kernel = functools.partial(_attn_core_kernel, num_heads=num_heads, scale=scale,
                               packed_qkv=packed_qkv)
    return pl.pallas_call(
        kernel,
        out_shape=jax.ShapeDtypeStruct((B, Tq, D), residual.dtype),
        grid=(B,),
        in_specs=in_specs,
        out_specs=pl.BlockSpec((1, Tq, D), lambda b: (b, 0, 0)),
        compiler_params=pltpu.CompilerParams(
            dimension_semantics=("parallel",),
            vmem_limit_bytes=_VMEM_LIMIT_BYTES),
    )(*inputs)


# ------------------- fused LN + FFN (Dff-tiled) + residual -------------------- #

def _ffn_kernel(x_ref, g_ref, b_ref, w1_ref, b1_ref, w2_ref, b2_ref, o_ref,
                xn_ref, acc_ref, *, eps):
    k = pl.program_id(1)

    @pl.when(k == 0)
    def _():
        x = x_ref[...].astype(jnp.float32)
        xn = _layernorm_f32(x, g_ref[...].astype(jnp.float32),
                            b_ref[...].astype(jnp.float32), eps)
        xn_ref[...] = xn.astype(xn_ref.dtype)          # bf16 scratch, reused across Dff tiles
        acc_ref[...] = jnp.zeros_like(acc_ref)

    # w1 contraction (over D) is complete per tile -> b1 + ReLU per Dff tile is exact.
    h = jnp.dot(xn_ref[...], w1_ref[...], preferred_element_type=jnp.float32)
    h = jnp.maximum(h + b1_ref[...].astype(jnp.float32), 0.0)     # (tm, tf), stays on-chip
    acc_ref[...] += jnp.dot(h.astype(w2_ref.dtype), w2_ref[...],
                            preferred_element_type=jnp.float32)

    @pl.when(k == pl.num_programs(1) - 1)
    def _():
        y = acc_ref[...] + b2_ref[...].astype(jnp.float32) + x_ref[...].astype(jnp.float32)
        o_ref[...] = y.astype(o_ref.dtype)


def fused_ffn(x2d, gamma, beta, w1, b1, w2, b2, eps=1e-6):
    N, D = x2d.shape
    Dff = w1.shape[1]
    w_isz = w1.dtype.itemsize

    def vmem_fn(tm, tf):
        return (2 * (tm * D * 4                        # x tile
                     + D * tf * w_isz + tf * 4         # w1 panel + b1
                     + tf * D * w_isz                  # w2 panel
                     + tm * D * 4)                     # out tile
                + tm * D * (2 + 4)                     # xn (bf16) + acc (f32) scratch
                + 3 * D * 4)                           # gamma/beta/b2
    tm, tf = _select_tiles(N, Dff, vmem_fn, _TILE_BUDGET_BYTES)

    return pl.pallas_call(
        functools.partial(_ffn_kernel, eps=eps),
        out_shape=jax.ShapeDtypeStruct((N, D), x2d.dtype),
        grid=(N // tm, Dff // tf),                     # Dff reduction axis last
        in_specs=[pl.BlockSpec((tm, D), lambda i, k: (i, 0)),
                  pl.BlockSpec((1, D), lambda i, k: (0, 0)),
                  pl.BlockSpec((1, D), lambda i, k: (0, 0)),
                  pl.BlockSpec((D, tf), lambda i, k: (0, k)),
                  pl.BlockSpec((1, tf), lambda i, k: (0, k)),
                  pl.BlockSpec((tf, D), lambda i, k: (k, 0)),
                  pl.BlockSpec((1, D), lambda i, k: (0, 0))],
        out_specs=pl.BlockSpec((tm, D), lambda i, k: (i, 0)),
        scratch_shapes=[pltpu.VMEM((tm, D), w1.dtype),        # LN'd activations (bf16)
                        pltpu.VMEM((tm, D), jnp.float32)],    # f32 accumulator
        compiler_params=pltpu.CompilerParams(
            dimension_semantics=("parallel", "arbitrary"),
            vmem_limit_bytes=_VMEM_LIMIT_BYTES),
    )(x2d, gamma.reshape(1, D), beta.reshape(1, D),
      w1, b1.reshape(1, Dff), w2, b2.reshape(1, D))


# ------------------------------- module glue -------------------------------- #

def prepare_decoder_params(p, compute_dtype=COMPUTE_DTYPE):
    """One-time weight packing (QKV / KV concat) + bf16 weight cast for the kernels."""
    out = dict(p)
    sa = dict(p["self_attn"])
    sa["w_qkv"] = jnp.concatenate([sa["wq"], sa["wk"], sa["wv"]], axis=1).astype(compute_dtype)
    sa["b_qkv"] = jnp.concatenate([sa["bq"], sa["bk"], sa["bv"]])
    sa["wo"] = sa["wo"].astype(compute_dtype)
    out["self_attn"] = sa
    ca = dict(p["src_attn"])
    ca["wq"] = ca["wq"].astype(compute_dtype)
    ca["w_kv"] = jnp.concatenate([ca["wk"], ca["wv"]], axis=1).astype(compute_dtype)
    ca["b_kv"] = jnp.concatenate([ca["bk"], ca["bv"]])
    ca["wo"] = ca["wo"].astype(compute_dtype)
    out["src_attn"] = ca
    out["ff_w1"] = p["ff_w1"].astype(compute_dtype)
    out["ff_w2"] = p["ff_w2"].astype(compute_dtype)
    return out


def decoder_layer_forward(params, x, memory, src_mask, tgt_mask):
    """DecoderLayer.forward with dropout p=0.0 (eval / identity)."""
    B, T, D = x.shape
    S = memory.shape[1]
    H = params["heads"]
    mem2d = memory.reshape(B * S, D)

    # sublayer[0]: LN -> packed QKV proj -> attention + Wo + residual (one kernel)
    sa = params["self_attn"]
    qkv = fused_linear(x.reshape(B * T, D), sa["w_qkv"], sa["b_qkv"],
                       gamma=params["ln0_g"], beta=params["ln0_b"],
                       out_dtype=COMPUTE_DTYPE)
    x = attention_block(qkv.reshape(B, T, 3 * D), None, tgt_mask,
                        sa["wo"], sa["bo"], x, H)

    # sublayer[1]: LN(x) -> Q proj ; memory -> packed KV proj ; attention + Wo + residual
    ca = params["src_attn"]
    q = fused_linear(x.reshape(B * T, D), ca["wq"], ca["bq"],
                     gamma=params["ln1_g"], beta=params["ln1_b"],
                     out_dtype=COMPUTE_DTYPE)
    kv = fused_linear(mem2d, ca["w_kv"], ca["b_kv"], out_dtype=COMPUTE_DTYPE)  # no LN
    x = attention_block(q.reshape(B, T, D), kv.reshape(B, S, 2 * D), src_mask,
                        ca["wo"], ca["bo"], x, H)

    # sublayer[2]: LN + w1 + ReLU + w2 + residual, single kernel, Dff-tiled
    out2d = fused_ffn(x.reshape(B * T, D), params["ln2_g"], params["ln2_b"],
                      params["ff_w1"], params["ff_b1"],
                      params["ff_w2"], params["ff_b2"])
    return out2d.reshape(B, T, D)


# ----------------------------- pure-JAX reference ---------------------------- #

def _ref_ln(x, g, b, eps=1e-6):
    mean = jnp.mean(x, -1, keepdims=True)
    xc = x - mean
    std = jnp.sqrt(jnp.sum(xc * xc, -1, keepdims=True) / (x.shape[-1] - 1))
    return g * xc / (std + eps) + b


def _ref_mha(p, q, k, v, mask, H):
    B, Tq, D = q.shape
    Tk = k.shape[1]
    dk = D // H
    def proj(x, w, b, T):
        return (x.reshape(B * T, D) @ w + b).reshape(B, T, H, dk).transpose(0, 2, 1, 3)
    qh = proj(q, p["wq"], p["bq"], Tq)
    kh = proj(k, p["wk"], p["bk"], Tk)
    vh = proj(v, p["wv"], p["bv"], Tk)
    s = jnp.einsum('bhqd,bhkd->bhqk', qh, kh) / math.sqrt(dk)
    s = jnp.where(mask[:, None, :, :] > 0, s, -1e9)
    pattn = jax.nn.softmax(s, axis=-1)
    o = jnp.einsum('bhqk,bhkd->bhqd', pattn, vh)
    o = o.transpose(0, 2, 1, 3).reshape(B * Tq, D)
    return (o @ p["wo"] + p["bo"]).reshape(B, Tq, D)


def _ref_forward(params, x, memory, src_mask, tgt_mask):
    H = params["heads"]
    xn = _ref_ln(x, params["ln0_g"], params["ln0_b"])
    x = x + _ref_mha(params["self_attn"], xn, xn, xn, tgt_mask, H)
    xn = _ref_ln(x, params["ln1_g"], params["ln1_b"])
    x = x + _ref_mha(params["src_attn"], xn, memory, memory, src_mask, H)
    xn = _ref_ln(x, params["ln2_g"], params["ln2_b"])
    B, T, D = x.shape
    h = jnp.maximum(xn.reshape(B * T, D) @ params["ff_w1"] + params["ff_b1"], 0.0)
    ff = (h @ params["ff_w2"] + params["ff_b2"]).reshape(B, T, D)
    return x + ff


# ----------------------------------- main ------------------------------------ #

def _init_params(key, D, Dff, H):
    ks = jax.random.split(key, 12)
    scale = 1.0 / math.sqrt(D)
    def w(k, shape):
        return jax.random.normal(k, shape, jnp.float32) * scale
    def attn_params(k4):
        k0, k1, k2, k3 = k4
        return {"wq": w(k0, (D, D)), "bq": jnp.zeros((D,), jnp.float32),
                "wk": w(k1, (D, D)), "bk": jnp.zeros((D,), jnp.float32),
                "wv": w(k2, (D, D)), "bv": jnp.zeros((D,), jnp.float32),
                "wo": w(k3, (D, D)), "bo": jnp.zeros((D,), jnp.float32)}
    return {
        "heads": H,
        "self_attn": attn_params(ks[0:4]),
        "src_attn":  attn_params(ks[4:8]),
        "ff_w1": w(ks[8], (D, Dff)), "ff_b1": jnp.zeros((Dff,), jnp.float32),
        "ff_w2": w(ks[9], (Dff, D)), "ff_b2": jnp.zeros((D,), jnp.float32),
        "ln0_g": jnp.ones((D,), jnp.float32), "ln0_b": jnp.zeros((D,), jnp.float32),
        "ln1_g": jnp.ones((D,), jnp.float32), "ln1_b": jnp.zeros((D,), jnp.float32),
        "ln2_g": jnp.ones((D,), jnp.float32), "ln2_b": jnp.zeros((D,), jnp.float32),
    }


if __name__ == "__main__":
    B, T, S, D, H, Dff = 2, 8, 8, 32, 4, 64
    key = jax.random.PRNGKey(0)
    kx, km, kp = jax.random.split(key, 3)

    x = jax.random.normal(kx, (B, T, D), jnp.float32)
    memory = jax.random.normal(km, (B, S, D), jnp.float32)
    tgt_mask = jnp.tril(jnp.ones((1, T, T), jnp.float32))   # causal (1, T, T)
    src_mask = jnp.ones((B, 1, S), jnp.float32)             # full    (B, 1, S)

    params = _init_params(kp, D, Dff, H)
    fused_params = prepare_decoder_params(params)

    out = decoder_layer_forward(fused_params, x, memory, src_mask, tgt_mask)
    out = jax.block_until_ready(out)

    ref = _ref_forward(params, x, memory, src_mask, tgt_mask)
    # Tolerance reflects the bf16 MXU operand path (f32 accumulation); the f32 reference
    # runs the same math at full precision.
    np.testing.assert_allclose(np.asarray(out), np.asarray(ref), rtol=5e-2, atol=5e-2)
    print("KERNEL_OK")
</pallas_src>

<mosaic_0001>
module attributes {stable_mosaic.version = 11 : i64} {
  func.func @_fused_linear_kernel(%arg0: i32, %arg1: i32, %arg2: memref<16x32xf32, #tpu.memory_space<vmem>>, %arg3: memref<1x32xf32, #tpu.memory_space<vmem>>, %arg4: memref<1x32xf32, #tpu.memory_space<vmem>>, %arg5: memref<32x96xbf16, #tpu.memory_space<vmem>>, %arg6: memref<1x96xf32, #tpu.memory_space<vmem>>, %arg7: memref<16x96xbf16, #tpu.memory_space<vmem>>) attributes {dimension_semantics = [#tpu.dimension_semantics<parallel>, #tpu.dimension_semantics<parallel>], iteration_bounds = array<i64: 1, 1>, scalar_prefetch = 0 : i64, scratch_operands = 0 : i64, tpu.core_type = #tpu.core_type<tc>, window_params = [{transform_indices = @transform_0, window_bounds = array<i64: 16, 32>}, {pipeline_mode = #tpu.pipeline_mode<synchronous>, transform_indices = @transform_1, window_bounds = array<i64: 1, 32>}, {pipeline_mode = #tpu.pipeline_mode<synchronous>, transform_indices = @transform_2, window_bounds = array<i64: 1, 32>}, {transform_indices = @transform_3, window_bounds = array<i64: 32, 96>}, {transform_indices = @transform_4, window_bounds = array<i64: 1, 96>}, {transform_indices = @transform_5, window_bounds = array<i64: 16, 96>}]} {
    %c0 = arith.constant 0 : index
    %c0_0 = arith.constant 0 : index
    %0 = vector.load %arg2[%c0, %c0_0] : memref<16x32xf32, #tpu.memory_space<vmem>>, vector<16x32xf32>
    %c0_1 = arith.constant 0 : index
    %c0_2 = arith.constant 0 : index
    %1 = vector.load %arg3[%c0_1, %c0_2] : memref<1x32xf32, #tpu.memory_space<vmem>>, vector<1x32xf32>
    %c0_3 = arith.constant 0 : index
    %c0_4 = arith.constant 0 : index
    %2 = vector.load %arg4[%c0_3, %c0_4] : memref<1x32xf32, #tpu.memory_space<vmem>>, vector<1x32xf32>
    %cst = arith.constant dense<0.000000e+00> : vector<16xf32>
    %3 = vector.multi_reduction <add>, %0, %cst [1] : vector<16x32xf32> to vector<16xf32>
    %4 = vector.shape_cast %3 : vector<16xf32> to vector<16x1xf32>
    %cst_5 = arith.constant 3.200000e+01 : f32
    %5 = vector.broadcast %cst_5 : f32 to vector<16x1xf32>
    %6 = arith.divf %4, %5 : vector<16x1xf32>
    %7 = vector.broadcast %6 : vector<16x1xf32> to vector<16x32xf32>
    %8 = arith.subf %0, %7 : vector<16x32xf32>
    %9 = arith.mulf %8, %8 : vector<16x32xf32>
    %cst_6 = arith.constant dense<0.000000e+00> : vector<16xf32>
    %10 = vector.multi_reduction <add>, %9, %cst_6 [1] : vector<16x32xf32> to vector<16xf32>
    %11 = vector.shape_cast %10 : vector<16xf32> to vector<16x1xf32>
    %cst_7 = arith.constant 0.0322580636 : f32
    %12 = vector.broadcast %cst_7 : f32 to vector<16x1xf32>
    %13 = arith.mulf %11, %12 : vector<16x1xf32>
    %14 = math.sqrt %13 : vector<16x1xf32>
    %15 = vector.broadcast %1 : vector<1x32xf32> to vector<16x32xf32>
    %16 = arith.mulf %15, %8 : vector<16x32xf32>
    %cst_8 = arith.constant 9.99999997E-7 : f32
    %17 = vector.broadcast %cst_8 : f32 to vector<16x1xf32>
    %18 = arith.addf %14, %17 : vector<16x1xf32>
    %19 = vector.broadcast %18 : vector<16x1xf32> to vector<16x32xf32>
    %20 = arith.divf %16, %19 : vector<16x32xf32>
    %21 = vector.broadcast %2 : vector<1x32xf32> to vector<16x32xf32>
    %22 = arith.addf %20, %21 : vector<16x32xf32>
    %23 = arith.truncf %22 : vector<16x32xf32> to vector<16x32xbf16>
    %c0_9 = arith.constant 0 : index
    %c0_10 = arith.constant 0 : index
    %24 = vector.load %arg5[%c0_9, %c0_10] : memref<32x96xbf16, #tpu.memory_space<vmem>>, vector<32x96xbf16>
    %cst_11 = arith.constant dense<0.000000e+00> : vector<16x96xf32>
    %25 = tpu.matmul %23, %24, %cst_11 {dimension_numbers = #tpu.dot_dimension_numbers<[1], [0], [0], [1], [0, 0, 1, 1], [], []>} : vector<16x32xbf16>, vector<32x96xbf16>, vector<16x96xf32> -> vector<16x96xf32>
    %c0_12 = arith.constant 0 : index
    %c0_13 = arith.constant 0 : index
    %26 = vector.load %arg6[%c0_12, %c0_13] : memref<1x96xf32, #tpu.memory_space<vmem>>, vector<1x96xf32>
    %27 = vector.broadcast %26 : vector<1x96xf32> to vector<16x96xf32>
    %28 = arith.addf %25, %27 : vector<16x96xf32>
    %29 = arith.truncf %28 : vector<16x96xf32> to vector<16x96xbf16>
    %c0_14 = arith.constant 0 : index
    %c0_15 = arith.constant 0 : index
    %30 = vector.load %arg7[%c0_14, %c0_15] : memref<16x96xbf16, #tpu.memory_space<vmem>>, vector<16x96xbf16>
    tpu.vector_store %arg7[%c0_14, %c0_15], %29 {strides = array<i32>} : memref<16x96xbf16, #tpu.memory_space<vmem>>, vector<16x96xbf16>,
    return
  }
  func.func @transform_0(%arg0: i32, %arg1: i32) -> (i32, i32) {
    %c0_i32 = arith.constant 0 : i32
    %c0_i32_0 = arith.constant 0 : i32
    return %arg1, %c0_i32 : i32, i32
  }
  func.func @transform_1(%arg0: i32, %arg1: i32) -> (i32, i32) {
    %c0_i32 = arith.constant 0 : i32
    %c0_i32_0 = arith.constant 0 : i32
    %c0_i32_1 = arith.constant 0 : i32
    return %c0_i32, %c0_i32_0 : i32, i32
  }
  func.func @transform_2(%arg0: i32, %arg1: i32) -> (i32, i32) {
    %c0_i32 = arith.constant 0 : i32
    %c0_i32_0 = arith.constant 0 : i32
    %c0_i32_1 = arith.constant 0 : i32
    return %c0_i32, %c0_i32_0 : i32, i32
  }
  func.func @transform_3(%arg0: i32, %arg1: i32) -> (i32, i32) {
    %c0_i32 = arith.constant 0 : i32
    %c0_i32_0 = arith.constant 0 : i32
    return %c0_i32, %arg0 : i32, i32
  }
  func.func @transform_4(%arg0: i32, %arg1: i32) -> (i32, i32) {
    %c0_i32 = arith.constant 0 : i32
    %c0_i32_0 = arith.constant 0 : i32
    return %c0_i32, %arg0 : i32, i32
  }
  func.func @transform_5(%arg0: i32, %arg1: i32) -> (i32, i32) {
    %c0_i32 = arith.constant 0 : i32
    return %arg1, %arg0 : i32, i32
  }
}

</mosaic_0001>

<llo_original>
// kernel: tpu_custom_call.1
$region0: #{tpu_custom_call.1}
  #allocation0 [shape = 'u32[]', space=smem, size = 0x4, offset = 0x4, fixed_abs, tag = 'smem constant byte address 0x4 - core index']
  #allocation1 [shape = 'u32[144,128]{1,0:T(1,128)}', space=vmem, size = 0x12000, scoped, tag = 'internal scratch']
  %s0 = inlined_call_operand.hbm [shape: f32[16,32], index: 0, kind: input, shape index: {}]
  %s1 = inlined_call_operand.vmem [shape: f32[1,32], index: 1, kind: input, shape index: {}]
  %s2 = inlined_call_operand.vmem [shape: f32[1,32], index: 2, kind: input, shape index: {}]
  %s3 = inlined_call_operand.hbm [shape: bf16[32,96], index: 3, kind: input, shape index: {}]
  %s4 = inlined_call_operand.vmem [shape: f32[1,96], index: 4, kind: input, shape index: {}]
  %s5 = inlined_call_operand.hbm [shape: bf16[16,96], index: 5, kind: output, shape index: {}]
  %s6 = sld [smem:[#allocation0]]
  $region38: #{tpu_custom_call.1} parent=0
    _
  %s8 = ssub.s32 1, %s6
  %s9 = scalar_select 0, %s8, %s6
  $region1: #{tpu_custom_call.1} parent=0
    #allocation2 [shape = 'u8[8192]{0}', space=vmem, size = 0x2000, scoped, tag = 'input window, operand 0, single buffered']
    #allocation3 [shape = 's32[1]{0}', space=sflag, size = 0x4, scoped, tag = 'scoped memory for tpu_custom_call.1']
    #allocation4 [shape = 's32[1]{0}', space=sflag, size = 0x4, scoped, tag = 'scoped memory for tpu_custom_call.1']
    #allocation5 [shape = 'u8[8192]{0}', space=vmem, size = 0x2000, scoped, tag = 'input window, operand 3, single buffered']
    #allocation6 [shape = 's32[1]{0}', space=sflag, size = 0x4, scoped, tag = 'scoped memory for tpu_custom_call.1']
    #allocation7 [shape = 'u8[4096]{0}', space=vmem, size = 0x1000, scoped, tag = 'output window, operand 0, single buffered']
    %10 = vsyncpa [#allocation3], 0
    %11 = vsyncpa [#allocation6], 0
    %12 = vsyncpa [#allocation4], 0
    // Predicated region
    $region2: #{tpu_custom_call.1} parent=1 // pred_check
      _
    $region3: #{tpu_custom_call.1} parent=1 // pred_check_branch
      %14 = sbr.rel (0) target = $region5
    $region4: #{tpu_custom_call.1} parent=1 // pred_region
      %s16 = ssub.s32 256, 256
      %17 = vsyncadd [#allocation3], %s16
      %s18 = sshll.u32 [#allocation2], 4
      %s19 = int_to_ptr.vmem [resolvable:$true] %s18
      %24 = dma.hbm_to_vmem [thread:$0]  %s0, 256, %s19, [#allocation3], 128, 128, 8
    $region5: #{tpu_custom_call.1} parent=1 // pred_fallthru
      _
    // Predicated region
    $region6: #{tpu_custom_call.1} parent=1 // pred_check
      _
    $region7: #{tpu_custom_call.1} parent=1 // pred_check_branch
      %26 = sbr.rel (0) target = $region9
    $region8: #{tpu_custom_call.1} parent=1 // pred_region
      _
    $region9: #{tpu_custom_call.1} parent=1 // pred_fallthru
      _
    // Predicated region
    $region10: #{tpu_custom_call.1} parent=1 // pred_check
      _
    $region11: #{tpu_custom_call.1} parent=1 // pred_check_branch
      %28 = sbr.rel (0) target = $region13
    $region12: #{tpu_custom_call.1} parent=1 // pred_region
      _
    $region13: #{tpu_custom_call.1} parent=1 // pred_fallthru
      _
    // Predicated region
    $region14: #{tpu_custom_call.1} parent=1 // pred_check
      _
    $region15: #{tpu_custom_call.1} parent=1 // pred_check_branch
      %30 = sbr.rel (0) target = $region17
    $region16: #{tpu_custom_call.1} parent=1 // pred_region
      %s32 = ssub.s32 256, 256
      %33 = vsyncadd [#allocation6], %s32
      %s34 = sshll.u32 [#allocation5], 4
      %s35 = int_to_ptr.vmem [resolvable:$true] %s34
      %40 = dma.hbm_to_vmem [thread:$0]  %s3, 256, %s35, [#allocation6], 64, 64, 4
    $region17: #{tpu_custom_call.1} parent=1 // pred_fallthru
      _
    // Predicated region
    $region18: #{tpu_custom_call.1} parent=1 // pred_check
      _
    $region19: #{tpu_custom_call.1} parent=1 // pred_check_branch
      %42 = sbr.rel (0) target = $region21
    $region20: #{tpu_custom_call.1} parent=1 // pred_region
      _
    $region21: #{tpu_custom_call.1} parent=1 // pred_fallthru
      _
    // Predicated region
    $region22: #{tpu_custom_call.1} parent=1 // pred_check
      _
    $region23: #{tpu_custom_call.1} parent=1 // pred_check_branch
      %44 = sbr.rel (0) target = $region25
    $region24: #{tpu_custom_call.1} parent=1 // pred_region
      %45 = dma.done [#allocation3], 256
    $region25: #{tpu_custom_call.1} parent=1 // pred_fallthru
      _
    // Predicated region
    $region26: #{tpu_custom_call.1} parent=1 // pred_check
      _
    $region27: #{tpu_custom_call.1} parent=1 // pred_check_branch
      %47 = sbr.rel (0) target = $region29
    $region28: #{tpu_custom_call.1} parent=1 // pred_region
      %48 = dma.done [#allocation6], 256
    $region29: #{tpu_custom_call.1} parent=1 // pred_fallthru
      _
    %v50 = vld [vmem:[#allocation2] sm:$0xff]
    %v51 = vld [vmem:[#allocation2 + $0x8] sm:$0xff]
    %v52 = vld [vmem:[%s1] sm:$0x1]
    %v53 = vld [vmem:[%s2] sm:$0x1]
    %vm54 = vcmask 261120
    %v55 = vsel %vm54, %v50, 0.0
    %56 = vadd.xlane.f32.xlu0 %v55
    %v57 = vpop.xlane.xlu0 %56
    %v58 = vsel %vm54, %v51, 0.0
    %59 = vadd.xlane.f32.xlu0 %v58
    %v60 = vpop.xlane.xlu0 %59
    %v61 = vrcp.pop 32.0
    %v62 = vmul.f32 %v57, %v61
    %v63 = vmul.f32 %v60, %v61
    %v64 = vsub.f32 %v50, %v62
    %v65 = vsub.f32 %v51, %v63
    %v66 = vmul.f32 %v64, %v64
    %v67 = vmul.f32 %v65, %v65
    %v68 = vsel %vm54, %v66, 0.0
    %69 = vadd.xlane.f32.xlu0 %v68
    %v70 = vpop.xlane.xlu0 %69
    %v71 = vsel %vm54, %v67, 0.0
    %72 = vadd.xlane.f32.xlu0 %v71
    %v73 = vpop.xlane.xlu0 %72
    %v74 = vmul.f32 %v70, 0.032258064
    %v75 = vmul.f32 %v73, 0.032258064
    %v76 = vrsqrt.pop %v74
    %v77 = vmul.f32 %v74, %v76
    %vm78 = vcmp.eq.f32.partialorder %v74, inf
    %v79 = vsel %vm78, %v74, %v77
    %vm80 = vcmp.eq.f32.partialorder %v74, 0.0
    %v81 = vand.u32 %v74, 2147483648
    %v82 = vsel %vm80, %v81, %v79
    %v83 = vrsqrt.pop %v75
    %v84 = vmul.f32 %v75, %v83
    %vm85 = vcmp.eq.f32.partialorder %v75, inf
    %v86 = vsel %vm85, %v75, %v84
    %vm87 = vcmp.eq.f32.partialorder %v75, 0.0
    %v88 = vand.u32 %v75, 2147483648
    %v89 = vsel %vm87, %v88, %v86
    %v91 = vlaneseq
    %v92 = vshrl.u32 %v91, 7
    %v93 = vsub.s32 0, %v92
    %v94 = vrot.slane %v52, %v93
    %v96 = vmul.f32 %v94, %v64
    %v97 = vmul.f32 %v94, %v65
    %v98 = vadd.f32 %v82, 1e-06
    %v99 = vadd.f32 %v89, 1e-06
    %v100 = vrcp.pop %v98
    %v101 = vmul.f32 %v96, %v100
    %v102 = vrcp.pop %v99
    %v103 = vmul.f32 %v97, %v102
    %v105 = vlaneseq
    %v106 = vshrl.u32 %v105, 7
    %v107 = vsub.s32 0, %v106
    %v108 = vrot.slane %v53, %v107
    %v110 = vadd.f32 %v101, %v108
    %v111 = vadd.f32 %v103, %v108
    %v112 = vpack.c.bf16 %v111, %v110
    %v113 = vld [vmem:[#allocation5] sm:$0xf]
    %v114 = vld [vmem:[#allocation5 + $0x4] sm:$0xf]
    %v115 = vld [vmem:[#allocation5 + $0x8] sm:$0xf]
    %v116 = vld [vmem:[#allocation5 + $0xc] sm:$0xf]
    %v117 = vld [vmem:[%s4] sm:$0x1]
    %v119 = vlaneseq
    %v120 = vshrl.u32 %v119, 7
    %v121 = vsub.s32 0, %v120
    %v122 = vrot.slane %v117, %v121
    %v128 = vunpack.c.l.b16 %v113
    %v129 = vunpack.c.l.b16 %v114
    %v130 = vunpack.c.l.b16 %v115
    %v131 = vunpack.c.l.b16 %v116
    %v132 = vpack.c.b16 %v129, %v128
    %v133 = vpack.c.b16 %v131, %v130
    %v137 = vsel %vm54, %v112, 0
    %139 = vmatprep.subr.bf16.mxu0 0
    %140 = vmatpush1.bf16.msra.mxu0 %v132
    %141 = vmatprep.subr.bf16.mxu0 0
    %142 = vmatpush1.bf16.msra.mxu0 %v133
    %143 = vmatprep.subr.bf16.mxu0 0
    %144 = vmatpush1.bf16.msra.mxu0 0
    %145 = vmatprep.subr.bf16.mxu0 0
    %146 = vmatpush1.bf16.msra.mxu0 0
    %147 = vmatprep.subr.bf16.mxu0 0
    %148 = vmatpush1.bf16.msra.mxu0 0
    %149 = vmatprep.subr.bf16.mxu0 0
    %150 = vmatpush1.bf16.msra.mxu0 0
    %151 = vmatprep.subr.bf16.mxu0 0
    %152 = vmatpush1.bf16.msra.mxu0 0
    %153 = vmatprep.subr.bf16.mxu0 0
    %154 = vmatpush1.bf16.msra.mxu0 0
    %155 = vmatprep.subr.bf16.mxu0 0
    %156 = vmatpush1.bf16.msra.mxu0 0
    %157 = vmatprep.subr.bf16.mxu0 0
    %158 = vmatpush1.bf16.msra.mxu0 0
    %159 = vmatprep.subr.bf16.mxu0 0
    %160 = vmatpush1.bf16.msra.mxu0 0
    %161 = vmatprep.subr.bf16.mxu0 0
    %162 = vmatpush1.bf16.msra.mxu0 0
    %163 = vmatprep.subr.bf16.mxu0 0
    %164 = vmatpush1.bf16.msra.mxu0 0
    %165 = vmatprep.subr.bf16.mxu0 0
    %166 = vmatpush1.bf16.msra.mxu0 0
    %167 = vmatprep.subr.bf16.mxu0 0
    %168 = vmatpush1.bf16.msra.mxu0 0
    %169 = vmatprep.subr.bf16.mxu0 0
    %170 = vmatpush1.bf16.msra.mxu0 0
    %171 = vmatprep.mubr.bf16.mxu0 0
    %172 = vmatmul.mubr.bf16.gmra.mrb[0].mxu0 %v137
    %v173 = vpop.f32.mrb[0].mxu0
    %v174 = vadd.f32 %v122, %v173
    %v175 = vpop.f32.mrb[0].mxu0
    %v176 = vpop.f32.mrb[0].mxu0
    %v177 = vadd.f32 %v122, %v176
    %v178 = vpop.f32.mrb[0].mxu0
    %179 = vdwg.mxu0
    %v180 = vpack.c.bf16 %v177, %v174
    %v182 = vunpack.c.l.b16 %v180
    %v183 = vunpack.c.h.b16 %v180
    %v184 = vpack.c.b16 %v182, %v182
    %v185 = vpack.c.b16 %v183, %v183
    %vm188 = vcmask 781312
    %189 = vst.msk [vmem:[#allocation7] sm:$0xf] %vm188, %v184
    %190 = vst.msk [vmem:[#allocation7 + $0x4] sm:$0xf] %vm188, %v185
    // Predicated region
    $region30: #{tpu_custom_call.1} parent=1 // pred_check
      _
    $region31: #{tpu_custom_call.1} parent=1 // pred_check_branch
      %192 = sbr.rel (0) target = $region33
    $region32: #{tpu_custom_call.1} parent=1 // pred_region
      %s194 = ssub.s32 128, 128
      %195 = vsyncadd [#allocation4], %s194
      %s196 = sshll.u32 [#allocation7], 4
      %s197 = int_to_ptr.vmem [resolvable:$true] %s196
      %202 = dma.vmem_to_hbm [thread:$0]  %s197, 128, %s5, [#allocation4], 64, 64, 4
    $region33: #{tpu_custom_call.1} parent=1 // pred_fallthru
      _
    // Predicated region
    $region34: #{tpu_custom_call.1} parent=1 // pred_check
      _
    $region35: #{tpu_custom_call.1} parent=1 // pred_check_branch
      %204 = sbr.rel (0) target = $region37
    $region36: #{tpu_custom_call.1} parent=1 // pred_region
      %205 = dma.done [#allocation4], 128
    $region37: #{tpu_custom_call.1} parent=1 // pred_fallthru
      _
    %206 = vsyncpa [#allocation3], 1
    %207 = vsyncpa [#allocation6], 1
    %208 = vsyncpa [#allocation4], 1

</llo_original>
